<compile_context>
chip_gen: v5e
topology: v5e:2x2
jax: 0.10.0
libtpu: 0.0.40
codegen_flags: <defaults>
</compile_context>

<pallas_src>
import functools

import jax
import jax.numpy as jnp
import numpy as np
from jax import lax
from jax.experimental import pallas as pl
from jax.experimental.pallas import tpu as pltpu


# ---------------------------------------------------------------------------
# Relative position index (same math as the torch buffer, done in numpy).
# ---------------------------------------------------------------------------
def get_position_index(window_size):
    wd, wh, ww = window_size
    coords = np.stack(
        np.meshgrid(np.arange(wd), np.arange(wh), np.arange(ww), indexing="ij")
    )                                                                     # (3, wd, wh, ww)
    coords_flatten = coords.reshape(3, -1)                                # (3, N)
    rel = coords_flatten[:, :, None] - coords_flatten[:, None, :]         # (3, N, N)
    rel = rel.transpose(1, 2, 0).astype(np.int64)                         # (N, N, 3)
    rel[:, :, 0] += wd - 1
    rel[:, :, 1] += wh - 1
    rel[:, :, 2] += ww - 1
    rel[:, :, 0] *= (2 * wh - 1) * (2 * ww - 1)
    rel[:, :, 1] *= 2 * ww - 1
    return rel.sum(-1)                                                    # (N, N)


# ---------------------------------------------------------------------------
# Pallas kernel: one block of `bblk` windows per grid step.
# ---------------------------------------------------------------------------
def window_attn_kernel(x_ref, wqkvt_ref, bqkvt_ref, biast_ref, wproj_ref, bproj_ref,
                       *rest, num_heads, bblk, n_tok, nwb, has_mask,
                       compute_dtype, exp_dtype):
    if has_mask:
        maskt_ref, o_ref, qkv_sc, xo_sc = rest
    else:
        maskt_ref = None
        o_ref, qkv_sc, xo_sc = rest

    C = wproj_ref.shape[0]
    H = num_heads
    hd = C // H
    N = n_tok
    f32 = jnp.float32

    def head_body(h, b):
        rq = pl.ds(pl.multiple_of(h * hd, hd), hd)
        rk = pl.ds(pl.multiple_of(C + h * hd, hd), hd)
        rv = pl.ds(pl.multiple_of(2 * C + h * hd, hd), hd)
        q_h = qkv_sc[rq, :].astype(compute_dtype)                   # (hd, Nq) channel-major
        k_h = qkv_sc[rk, :].astype(compute_dtype)                   # (hd, Nk)
        v_h = qkv_sc[rv, :].astype(compute_dtype)                   # (hd, Nk)

        # S^T[k, q] = sum_d K[d, k] * Q[d, q]: trans-lhs contraction over hd (the
        # sublane dim of both operands) -> no XLU transpose / stack of K.
        s_t = lax.dot_general(k_h, q_h, (((0,), (0,)), ((), ())),
                              preferred_element_type=f32)           # (Nk, Nq) f32
        s_t = s_t + biast_ref[h].astype(f32)                        # rel-pos bias (key-major)
        if has_mask:
            w = (b % nwb) if nwb > 1 else 0
            s_t = s_t + maskt_ref[w].astype(f32)                    # shifted-window mask

        # Softmax over keys (axis 0).  exp in exp_dtype (bf16 on v6e/v7x EUP, f32 on
        # v5e); denominator accumulated in f32; normalization deferred to the output.
        m = jnp.max(s_t, axis=0, keepdims=True)                     # (1, Nq) f32
        p = jnp.exp((s_t - m).astype(exp_dtype))                    # (Nk, Nq)
        denom = jnp.sum(p, axis=0, keepdims=True, dtype=f32)        # (1, Nq) f32

        # O^T[d, q] = sum_k V[d, k] * P[k, q]; scale by 1/denom on the EUP.
        o_h = jnp.dot(v_h, p.astype(compute_dtype),
                      preferred_element_type=f32)                   # (hd, Nq) f32
        o_h = o_h * pl.reciprocal(denom, approx=True)
        xo_sc[rq, :] = o_h.astype(xo_sc.dtype)
        return b

    def window_body(b, carry):
        # QKV projection for window b: (3C, Cin) x (N, Cin) -> (3C, N)  (rhs-transposed
        # form).  The qk scale is folded into the q rows of wqkvt/bqkvt in the wrapper.
        x_b = x_ref[b].astype(compute_dtype)                        # (N, Cin)
        qkv_t = lax.dot_general(wqkvt_ref[...], x_b, (((1,), (1,)), ((), ())),
                                preferred_element_type=f32)         # (3C, N) f32
        qkv_sc[...] = (qkv_t + bqkvt_ref[...]).astype(qkv_sc.dtype)

        # Per-head attention; fori_loop bounds the live f32 set to ~one (N, N) tile.
        lax.fori_loop(0, H, head_body, b)

        # Output projection straight back to the natural token-major layout:
        # (Cin, N) x (Cin, Cout) -> (N, Cout)  (lhs-transposed form, no XLU transpose).
        y_b = lax.dot_general(xo_sc[...].astype(compute_dtype), wproj_ref[...],
                              (((0,), (0,)), ((), ())),
                              preferred_element_type=f32)           # (N, Cout) f32
        o_ref[b] = (y_b + bproj_ref[...]).astype(o_ref.dtype)
        return carry

    lax.fori_loop(0, bblk, window_body, 0)


# ---------------------------------------------------------------------------
# Wrapper
# ---------------------------------------------------------------------------
def _pick_block_windows(b_total, nwb, n_tok, max_tokens=1024, min_blocks=2):
    """Windows per grid step: multiple of nwb dividing b_total with bblk*n_tok <=
    max_tokens, preferring to leave >= min_blocks grid steps (v7x 2nd TC / pipeline)."""
    cands = [c for c in range(nwb, b_total + 1, nwb)
             if b_total % c == 0 and c * n_tok <= max_tokens]
    if not cands:
        return nwb                       # nwb*n_tok already over budget: smallest legal block.
    good = [c for c in cands if b_total // c >= min_blocks]
    return max(good) if good else max(cands)


def _default_exp_dtype():
    # bf16 EUP exists on v6e/v7x; keep softmax math f32 on v5e and older chips.
    try:
        kind = jax.devices()[0].device_kind.lower()
    except Exception:
        kind = ""
    if ("v6" in kind) or ("v7" in kind) or ("7x" in kind):
        return jnp.bfloat16
    return jnp.float32


def window_attention(x, params, num_heads, mask=None, qk_scale=None,
                     compute_dtype=jnp.bfloat16, exp_dtype=None,
                     max_block_tokens=1024):
    # NOTE: raise max_block_tokens to 2048-4096 on v5e/v6e (128 MiB VMEM); keep it
    # around 1024-2048 on v7x (64 MiB VMEM).
    B_, N, C = x.shape
    if C % num_heads != 0:
        raise ValueError("dim must be divisible by num_heads")
    hd = C // num_heads
    scale = qk_scale or hd ** (-0.5)
    f32 = jnp.float32
    if exp_dtype is None:
        exp_dtype = _default_exp_dtype()

    # Relative-position bias gather (plain-JAX glue).  Bias and mask stay un-fused
    # (two cheap VPU adds in-kernel): resident memory (H+nW)*N*N, not nW*H*N*N.
    rpi = params["relative_position_index"][:N, :N].reshape(-1)
    bias = params["relative_position_bias_table"][rpi].reshape(N, N, num_heads)
    # Kernel computes scores in (key, query) orientation -> pre-transpose here.
    bias_t = jnp.transpose(bias, (2, 1, 0)).astype(compute_dtype)          # (H, Nk, Nq)

    if mask is None:
        has_mask = False
        nwb = 1
        mask_args, mask_specs = (), ()
    else:
        has_mask = True
        nwb = mask.shape[0]
        if B_ % nwb != 0:
            raise ValueError("B_ must be a multiple of the number of masked windows.")
        mask_t = jnp.swapaxes(mask[:, :N, :N], -1, -2).astype(compute_dtype)  # (nW, Nk, Nq)
        mask_args = (mask_t,)
        mask_specs = (pl.BlockSpec((nwb, N, N), lambda i: (0, 0, 0)),)

    # Windows per grid step (multiple of nW so `b % nW` is block-invariant).
    bblk = _pick_block_windows(B_, nwb, N, max_block_tokens)
    nblk = B_ // bblk

    # Weights: QKV as (out, in) with the qk scale folded into the q rows; proj kept
    # in its natural (in, out) layout (consumed via a trans-lhs dot_general).
    qrow_scale = jnp.concatenate([jnp.full((C,), scale, f32), jnp.ones((2 * C,), f32)])
    wqkv_t = (params["wqkv"].astype(f32) * qrow_scale[None, :]).T.astype(compute_dtype)  # (3C, C)
    bqkv_t = (params["bqkv"].astype(f32) * qrow_scale).reshape(3 * C, 1)                 # (3C, 1) f32
    wproj = params["wproj"].astype(compute_dtype)                                        # (C, C)
    bproj = params["bproj"].astype(f32).reshape(1, C)                                    # (1, C) f32

    # bf16 scratch only when hd-row head slices are 16-row (packed-tile) aligned.
    slab_dtype = compute_dtype if hd % 16 == 0 else jnp.float32

    # VMEM budget estimate -> explicit scoped-VMEM limit (clamped; on v7x shrink
    # max_block_tokens instead of pushing past its 64 MiB physical VMEM).
    def nbytes(shape, dtype):
        return int(np.prod(shape)) * jnp.dtype(dtype).itemsize

    est = 2 * 2 * nbytes((bblk, N, C), x.dtype)                 # x + out blocks, double-buffered
    est += 2 * (nbytes((3 * C, C), compute_dtype) + nbytes((3 * C, 1), f32)
                + nbytes((num_heads, N, N), compute_dtype)
                + nbytes((C, C), compute_dtype) + nbytes((1, C), f32))
    if has_mask:
        est += 2 * nbytes((nwb, N, N), compute_dtype)
    est += nbytes((3 * C, N), slab_dtype) + nbytes((C, N), slab_dtype)
    vmem_limit = int(min(max(2 * est, 32 * 1024 * 1024), 112 * 1024 * 1024))
    # TODO(synk): grid-invariant inputs (weights, bias, mask) could use
    # pipeline_mode=pl.Buffered(1) to drop their second buffer once exercised here.
    # TODO(synk): for window sizes where N is not a lane multiple (e.g. N=112), pad N
    # to 128 for better tiling; the current code is correct but relies on Mosaic padding.
    # TODO(synk): best end-to-end option is to plumb a channel-major (C, T) activation
    # layout through the adjacent RVRT layers instead of re-deriving it per kernel.

    kernel = functools.partial(
        window_attn_kernel, num_heads=num_heads, bblk=bblk, n_tok=N, nwb=nwb,
        has_mask=has_mask, compute_dtype=compute_dtype, exp_dtype=exp_dtype)

    out = pl.pallas_call(
        kernel,
        out_shape=jax.ShapeDtypeStruct((B_, N, C), x.dtype),
        grid_spec=pltpu.PrefetchScalarGridSpec(
            num_scalar_prefetch=0,
            grid=(nblk,),
            in_specs=[
                pl.BlockSpec((bblk, N, C), lambda i: (i, 0, 0)),           # x (natural layout)
                pl.BlockSpec((3 * C, C), lambda i: (0, 0)),                # Wqkv^T (scaled)
                pl.BlockSpec((3 * C, 1), lambda i: (0, 0)),                # bqkv^T (scaled)
                pl.BlockSpec((num_heads, N, N), lambda i: (0, 0, 0)),      # rel-pos bias (key-major)
                pl.BlockSpec((C, C), lambda i: (0, 0)),                    # Wproj (in, out)
                pl.BlockSpec((1, C), lambda i: (0, 0)),                    # bproj
                *mask_specs,                                               # optional window mask
            ],
            out_specs=pl.BlockSpec((bblk, N, C), lambda i: (i, 0, 0)),
            scratch_shapes=[
                pltpu.VMEM((3 * C, N), slab_dtype),   # per-window QKV slab (channel-major)
                pltpu.VMEM((C, N), slab_dtype),       # per-window head outputs (sublane-stacked)
            ],
        ),
        compiler_params=pltpu.CompilerParams(
            dimension_semantics=("parallel",),
            vmem_limit_bytes=vmem_limit),
    )(x, wqkv_t, bqkv_t, bias_t, wproj, bproj, *mask_args)
    return out


# ---------------------------------------------------------------------------
# Pure-JAX reference (mirrors the PyTorch forward) for validation.
# ---------------------------------------------------------------------------
def reference(x, params, num_heads, mask=None, qk_scale=None):
    B_, N, C = x.shape
    hd = C // num_heads
    scale = qk_scale or hd ** (-0.5)
    qkv = (x @ params["wqkv"] + params["bqkv"]).reshape(B_, N, 3, num_heads, hd)
    qkv = jnp.transpose(qkv, (2, 0, 3, 1, 4))
    q, k, v = qkv[0], qkv[1], qkv[2]
    attn = (q * scale) @ jnp.swapaxes(k, -2, -1)
    rpi = params["relative_position_index"]
    bias = params["relative_position_bias_table"][rpi[:N, :N].reshape(-1)]
    bias = jnp.transpose(bias.reshape(N, N, num_heads), (2, 0, 1))
    attn = attn + bias[None]
    if mask is not None:
        nW = mask.shape[0]
        attn = attn.reshape(B_ // nW, nW, num_heads, N, N) + mask[:, :N, :N][None, :, None]
        attn = attn.reshape(-1, num_heads, N, N)
    attn = jax.nn.softmax(attn, -1)
    xo = jnp.transpose(attn @ v, (0, 2, 1, 3)).reshape(B_, N, C)
    return xo @ params["wproj"] + params["bproj"]


# ---------------------------------------------------------------------------
if __name__ == "__main__":
    # Module config (small): dim=32, window_size=(2,8,8) -> N=128 tokens, 4 heads.
    dim = 32
    num_heads = 4
    window_size = (2, 8, 8)
    N = window_size[0] * window_size[1] * window_size[2]      # 128
    nW = 2                                                    # windows per image
    B = 2
    B_ = B * nW                                               # 4

    key = jax.random.PRNGKey(0)
    k_x, k_t, k_qw, k_qb, k_pw, k_pb, k_m = jax.random.split(key, 7)

    table_len = (2 * window_size[0] - 1) * (2 * window_size[1] - 1) * (2 * window_size[2] - 1)
    params = {
        "relative_position_bias_table": 0.02 * jax.random.normal(k_t, (table_len, num_heads), jnp.float32),
        "relative_position_index": jnp.asarray(get_position_index(window_size), jnp.int32),
        # Linear weights stored as (in, out) so y = x @ W + b.
        "wqkv": 0.02 * jax.random.normal(k_qw, (dim, 3 * dim), jnp.float32),
        "bqkv": 0.02 * jax.random.normal(k_qb, (3 * dim,), jnp.float32),
        "wproj": 0.02 * jax.random.normal(k_pw, (dim, dim), jnp.float32),
        "bproj": 0.02 * jax.random.normal(k_pb, (dim,), jnp.float32),
    }

    x = jax.random.normal(k_x, (B_, N, dim), jnp.float32)
    # Optional 0 / -100 window mask (shifted-window style), shape (nW, N, N).
    mask = jnp.where(jax.random.bernoulli(k_m, 0.1, (nW, N, N)), -100.0, 0.0).astype(jnp.float32)

    out_masked = window_attention(x, params, num_heads, mask=mask)
    out_nomask = window_attention(x, params, num_heads, mask=None)
    jax.block_until_ready(out_masked)
    jax.block_until_ready(out_nomask)

    ref_masked = reference(x, params, num_heads, mask=mask)
    ref_nomask = reference(x, params, num_heads, mask=None)

    # bf16 MXU feed + bf16 bias/exp + approx reciprocal -> looser than pure-f32 tolerance.
    assert jnp.allclose(out_masked, ref_masked, atol=5e-3, rtol=5e-2), \
        float(jnp.max(jnp.abs(out_masked - ref_masked)))
    assert jnp.allclose(out_nomask, ref_nomask, atol=5e-3, rtol=5e-2), \
        float(jnp.max(jnp.abs(out_nomask - ref_nomask)))

    print("KERNEL_OK")
</pallas_src>

<mosaic_0001>
module attributes {stable_mosaic.version = 11 : i64} {
  func.func @window_attn_kernel(%arg0: i32, %arg1: memref<2x128x32xf32, #tpu.memory_space<vmem>>, %arg2: memref<96x32xbf16, #tpu.memory_space<vmem>>, %arg3: memref<96x1xf32, #tpu.memory_space<vmem>>, %arg4: memref<4x128x128xbf16, #tpu.memory_space<vmem>>, %arg5: memref<32x32xbf16, #tpu.memory_space<vmem>>, %arg6: memref<1x32xf32, #tpu.memory_space<vmem>>, %arg7: memref<2x128x128xbf16, #tpu.memory_space<vmem>>, %arg8: memref<2x128x32xf32, #tpu.memory_space<vmem>>, %arg9: memref<96x128xf32, #tpu.memory_space<vmem>>, %arg10: memref<32x128xf32, #tpu.memory_space<vmem>>) attributes {dimension_semantics = [#tpu.dimension_semantics<parallel>], iteration_bounds = array<i64: 2>, scalar_prefetch = 0 : i64, scratch_operands = 2 : i64, tpu.core_type = #tpu.core_type<tc>, window_params = [{transform_indices = @transform_0, window_bounds = array<i64: 2, 128, 32>}, {pipeline_mode = #tpu.pipeline_mode<synchronous>, transform_indices = @transform_1, window_bounds = array<i64: 96, 32>}, {pipeline_mode = #tpu.pipeline_mode<synchronous>, transform_indices = @transform_2, window_bounds = array<i64: 96, 1>}, {pipeline_mode = #tpu.pipeline_mode<synchronous>, transform_indices = @transform_3, window_bounds = array<i64: 4, 128, 128>}, {pipeline_mode = #tpu.pipeline_mode<synchronous>, transform_indices = @transform_4, window_bounds = array<i64: 32, 32>}, {pipeline_mode = #tpu.pipeline_mode<synchronous>, transform_indices = @transform_5, window_bounds = array<i64: 1, 32>}, {pipeline_mode = #tpu.pipeline_mode<synchronous>, transform_indices = @transform_6, window_bounds = array<i64: 2, 128, 128>}, {transform_indices = @transform_7, window_bounds = array<i64: 2, 128, 32>}]} {
    %c0_i32 = arith.constant 0 : i32
    %c2_i32 = arith.constant 2 : i32
    %0 = arith.addi %c0_i32, %c2_i32 : i32
    %c1_i32 = arith.constant 1 : i32
    scf.for %arg11 = %c0_i32 to %0 step %c1_i32  : i32 {
      %1 = arith.index_cast %arg11 : i32 to index
      %c0 = arith.constant 0 : index
      %c0_1 = arith.constant 0 : index
      %2 = vector.load %arg1[%1, %c0, %c0_1] : memref<2x128x32xf32, #tpu.memory_space<vmem>>, vector<1x128x32xf32>
      %3 = vector.shape_cast %2 : vector<1x128x32xf32> to vector<128x32xf32>
      %4 = arith.truncf %3 : vector<128x32xf32> to vector<128x32xbf16>
      %c0_2 = arith.constant 0 : index
      %c0_3 = arith.constant 0 : index
      %5 = vector.load %arg2[%c0_2, %c0_3] : memref<96x32xbf16, #tpu.memory_space<vmem>>, vector<96x32xbf16>
      %cst = arith.constant dense<0.000000e+00> : vector<96x128xf32>
      %6 = tpu.matmul %5, %4, %cst {dimension_numbers = #tpu.dot_dimension_numbers<[1], [1], [0], [0], [0, 0, 1, 0], [], []>} : vector<96x32xbf16>, vector<128x32xbf16>, vector<96x128xf32> -> vector<96x128xf32>
      %c0_4 = arith.constant 0 : index
      %c0_5 = arith.constant 0 : index
      %7 = vector.load %arg3[%c0_4, %c0_5] : memref<96x1xf32, #tpu.memory_space<vmem>>, vector<96x1xf32>
      %8 = vector.broadcast %7 : vector<96x1xf32> to vector<96x128xf32>
      %9 = arith.addf %6, %8 : vector<96x128xf32>
      %c0_6 = arith.constant 0 : index
      %c0_7 = arith.constant 0 : index
      %10 = vector.load %arg9[%c0_6, %c0_7] : memref<96x128xf32, #tpu.memory_space<vmem>>, vector<96x128xf32>
      tpu.vector_store %arg9[%c0_6, %c0_7], %9 {strides = array<i32>} : memref<96x128xf32, #tpu.memory_space<vmem>>, vector<96x128xf32>,
      %c0_i32_8 = arith.constant 0 : i32
      %c4_i32 = arith.constant 4 : i32
      %11 = arith.addi %c0_i32_8, %c4_i32 : i32
      %c1_i32_9 = arith.constant 1 : i32
      scf.for %arg12 = %c0_i32_8 to %11 step %c1_i32_9  : i32 {
        %c8_i32 = arith.constant 8 : i32
        %23 = arith.muli %arg12, %c8_i32 : i32
        %24 = tpu.assume_multiple %23, 8 : i32
        %c8_i32_20 = arith.constant 8 : i32
        %25 = arith.muli %arg12, %c8_i32_20 : i32
        %c32_i32 = arith.constant 32 : i32
        %26 = arith.addi %c32_i32, %25 : i32
        %27 = tpu.assume_multiple %26, 8 : i32
        %c8_i32_21 = arith.constant 8 : i32
        %28 = arith.muli %arg12, %c8_i32_21 : i32
        %c64_i32 = arith.constant 64 : i32
        %29 = arith.addi %c64_i32, %28 : i32
        %30 = tpu.assume_multiple %29, 8 : i32
        %31 = arith.index_cast %24 : i32 to index
        %c0_22 = arith.constant 0 : index
        %32 = vector.load %arg9[%31, %c0_22] : memref<96x128xf32, #tpu.memory_space<vmem>>, vector<8x128xf32>
        %33 = arith.truncf %32 : vector<8x128xf32> to vector<8x128xbf16>
        %34 = arith.index_cast %27 : i32 to index
        %c0_23 = arith.constant 0 : index
        %35 = vector.load %arg9[%34, %c0_23] : memref<96x128xf32, #tpu.memory_space<vmem>>, vector<8x128xf32>
        %36 = arith.truncf %35 : vector<8x128xf32> to vector<8x128xbf16>
        %37 = arith.index_cast %30 : i32 to index
        %c0_24 = arith.constant 0 : index
        %38 = vector.load %arg9[%37, %c0_24] : memref<96x128xf32, #tpu.memory_space<vmem>>, vector<8x128xf32>
        %39 = arith.truncf %38 : vector<8x128xf32> to vector<8x128xbf16>
        %cst_25 = arith.constant dense<0.000000e+00> : vector<128x128xf32>
        %40 = tpu.matmul %36, %33, %cst_25 {dimension_numbers = #tpu.dot_dimension_numbers<[0], [0], [1], [1], [0, 1, 1, 1], [], []>} : vector<8x128xbf16>, vector<8x128xbf16>, vector<128x128xf32> -> vector<128x128xf32>
        %41 = arith.index_cast %arg12 : i32 to index
        %c0_26 = arith.constant 0 : index
        %c0_27 = arith.constant 0 : index
        %42 = vector.load %arg4[%41, %c0_26, %c0_27] : memref<4x128x128xbf16, #tpu.memory_space<vmem>>, vector<1x128x128xbf16>
        %43 = vector.shape_cast %42 : vector<1x128x128xbf16> to vector<128x128xbf16>
        %44 = arith.extf %43 : vector<128x128xbf16> to vector<128x128xf32>
        %45 = arith.addf %40, %44 : vector<128x128xf32>
        %c2_i32_28 = arith.constant 2 : i32
        %c0_i32_29 = arith.constant 0 : i32
        %46 = arith.cmpi eq, %c2_i32_28, %c0_i32_29 : i32
        %c1_i32_30 = arith.constant 1 : i32
        %47 = arith.select %46, %c1_i32_30, %c2_i32_28 : i32
        %48 = arith.remsi %arg11, %47 : i32
        %c0_i32_31 = arith.constant 0 : i32
        %49 = arith.cmpi ne, %48, %c0_i32_31 : i32
        %c0_i32_32 = arith.constant 0 : i32
        %50 = arith.cmpi slt, %48, %c0_i32_32 : i32
        %c0_i32_33 = arith.constant 0 : i32
        %51 = arith.cmpi slt, %47, %c0_i32_33 : i32
        %52 = arith.xori %50, %51 : i1
        %53 = arith.andi %52, %49 : i1
        %54 = arith.addi %48, %47 : i32
        %55 = arith.select %53, %54, %48 : i32
        %56 = arith.index_cast %55 : i32 to index
        %c0_34 = arith.constant 0 : index
        %c0_35 = arith.constant 0 : index
        %57 = vector.load %arg7[%56, %c0_34, %c0_35] : memref<2x128x128xbf16, #tpu.memory_space<vmem>>, vector<1x128x128xbf16>
        %58 = vector.shape_cast %57 : vector<1x128x128xbf16> to vector<128x128xbf16>
        %59 = arith.extf %58 : vector<128x128xbf16> to vector<128x128xf32>
        %60 = arith.addf %45, %59 : vector<128x128xf32>
        %cst_36 = arith.constant dense<0xFF800000> : vector<128xf32>
        %61 = vector.multi_reduction <maximumf>, %60, %cst_36 [0] : vector<128x128xf32> to vector<128xf32>
        %62 = vector.shape_cast %61 : vector<128xf32> to vector<1x128xf32>
        %63 = vector.broadcast %62 : vector<1x128xf32> to vector<128x128xf32>
        %64 = arith.subf %60, %63 : vector<128x128xf32>
        %65 = math.exp %64 : vector<128x128xf32>
        %cst_37 = arith.constant dense<0.000000e+00> : vector<128xf32>
        %66 = vector.multi_reduction <add>, %65, %cst_37 [0] : vector<128x128xf32> to vector<128xf32>
        %67 = vector.shape_cast %66 : vector<128xf32> to vector<1x128xf32>
        %68 = arith.truncf %65 : vector<128x128xf32> to vector<128x128xbf16>
        %cst_38 = arith.constant dense<0.000000e+00> : vector<8x128xf32>
        %69 = tpu.matmul %39, %68, %cst_38 {dimension_numbers = #tpu.dot_dimension_numbers<[1], [0], [0], [1], [0, 0, 1, 1], [], []>} : vector<8x128xbf16>, vector<128x128xbf16>, vector<8x128xf32> -> vector<8x128xf32>
        %70 = tpu.reciprocal %67 {approx = true} : vector<1x128xf32> -> vector<1x128xf32>
        %71 = vector.broadcast %70 : vector<1x128xf32> to vector<8x128xf32>
        %72 = arith.mulf %69, %71 : vector<8x128xf32>
        %73 = arith.index_cast %24 : i32 to index
        %c0_39 = arith.constant 0 : index
        %74 = vector.load %arg10[%73, %c0_39] : memref<32x128xf32, #tpu.memory_space<vmem>>, vector<8x128xf32>
        tpu.vector_store %arg10[%73, %c0_39], %72 {strides = array<i32>} : memref<32x128xf32, #tpu.memory_space<vmem>>, vector<8x128xf32>,
      }
      %c4_i32_10 = arith.constant 4 : i32
      %c0_11 = arith.constant 0 : index
      %c0_12 = arith.constant 0 : index
      %12 = vector.load %arg10[%c0_11, %c0_12] : memref<32x128xf32, #tpu.memory_space<vmem>>, vector<32x128xf32>
      %13 = arith.truncf %12 : vector<32x128xf32> to vector<32x128xbf16>
      %c0_13 = arith.constant 0 : index
      %c0_14 = arith.constant 0 : index
      %14 = vector.load %arg5[%c0_13, %c0_14] : memref<32x32xbf16, #tpu.memory_space<vmem>>, vector<32x32xbf16>
      %cst_15 = arith.constant dense<0.000000e+00> : vector<128x32xf32>
      %15 = tpu.matmul %13, %14, %cst_15 {dimension_numbers = #tpu.dot_dimension_numbers<[0], [0], [1], [1], [0, 1, 1, 1], [], []>} : vector<32x128xbf16>, vector<32x32xbf16>, vector<128x32xf32> -> vector<128x32xf32>
      %c0_16 = arith.constant 0 : index
      %c0_17 = arith.constant 0 : index
      %16 = vector.load %arg6[%c0_16, %c0_17] : memref<1x32xf32, #tpu.memory_space<vmem>>, vector<1x32xf32>
      %17 = vector.broadcast %16 : vector<1x32xf32> to vector<128x32xf32>
      %18 = arith.addf %15, %17 : vector<128x32xf32>
      %19 = arith.index_cast %arg11 : i32 to index
      %c0_18 = arith.constant 0 : index
      %c0_19 = arith.constant 0 : index
      %20 = vector.load %arg8[%19, %c0_18, %c0_19] : memref<2x128x32xf32, #tpu.memory_space<vmem>>, vector<1x128x32xf32>
      %21 = vector.shape_cast %20 : vector<1x128x32xf32> to vector<128x32xf32>
      %22 = vector.shape_cast %18 : vector<128x32xf32> to vector<1x128x32xf32>
      tpu.vector_store %arg8[%19, %c0_18, %c0_19], %22 {strides = array<i32>} : memref<2x128x32xf32, #tpu.memory_space<vmem>>, vector<1x128x32xf32>,
    }
    %c2_i32_0 = arith.constant 2 : i32
    return
  }
  func.func @transform_0(%arg0: i32) -> (i32, i32, i32) {
    %c0_i32 = arith.constant 0 : i32
    %c0_i32_0 = arith.constant 0 : i32
    %c0_i32_1 = arith.constant 0 : i32
    return %arg0, %c0_i32, %c0_i32_0 : i32, i32, i32
  }
  func.func @transform_1(%arg0: i32) -> (i32, i32) {
    %c0_i32 = arith.constant 0 : i32
    %c0_i32_0 = arith.constant 0 : i32
    %c0_i32_1 = arith.constant 0 : i32
    return %c0_i32, %c0_i32_0 : i32, i32
  }
  func.func @transform_2(%arg0: i32) -> (i32, i32) {
    %c0_i32 = arith.constant 0 : i32
    %c0_i32_0 = arith.constant 0 : i32
    %c0_i32_1 = arith.constant 0 : i32
    return %c0_i32, %c0_i32_0 : i32, i32
  }
  func.func @transform_3(%arg0: i32) -> (i32, i32, i32) {
    %c0_i32 = arith.constant 0 : i32
    %c0_i32_0 = arith.constant 0 : i32
    %c0_i32_1 = arith.constant 0 : i32
    %c0_i32_2 = arith.constant 0 : i32
    return %c0_i32, %c0_i32_0, %c0_i32_1 : i32, i32, i32
  }
  func.func @transform_4(%arg0: i32) -> (i32, i32) {
    %c0_i32 = arith.constant 0 : i32
    %c0_i32_0 = arith.constant 0 : i32
    %c0_i32_1 = arith.constant 0 : i32
    return %c0_i32, %c0_i32_0 : i32, i32
  }
  func.func @transform_5(%arg0: i32) -> (i32, i32) {
    %c0_i32 = arith.constant 0 : i32
    %c0_i32_0 = arith.constant 0 : i32
    %c0_i32_1 = arith.constant 0 : i32
    return %c0_i32, %c0_i32_0 : i32, i32
  }
  func.func @transform_6(%arg0: i32) -> (i32, i32, i32) {
    %c0_i32 = arith.constant 0 : i32
    %c0_i32_0 = arith.constant 0 : i32
    %c0_i32_1 = arith.constant 0 : i32
    %c0_i32_2 = arith.constant 0 : i32
    return %c0_i32, %c0_i32_0, %c0_i32_1 : i32, i32, i32
  }
  func.func @transform_7(%arg0: i32) -> (i32, i32, i32) {
    %c0_i32 = arith.constant 0 : i32
    %c0_i32_0 = arith.constant 0 : i32
    %c0_i32_1 = arith.constant 0 : i32
    return %arg0, %c0_i32, %c0_i32_0 : i32, i32, i32
  }
}

</mosaic_0001>

<llo_original>
// kernel: tpu_custom_call.1
$region0: #{tpu_custom_call.1}
  #allocation0 [shape = 'u32[]', space=smem, size = 0x4, offset = 0x4, fixed_abs, tag = 'smem constant byte address 0x4 - core index']
  #allocation1 [shape = 'u32[72,128]{1,0:T(1,128)}', space=vmem, size = 0x9000, scoped, tag = 'internal scratch']
  #allocation2 [shape = 'f32[96,128]{1,0:T(8,128)}', space=vmem, size = 0xc000, scoped, tag = 'scratch operand']
  #allocation3 [shape = 'f32[32,128]{1,0:T(8,128)}', space=vmem, size = 0x4000, scoped, tag = 'scratch operand']
  %s0 = inlined_call_operand.vmem [shape: f32[4,128,32], index: 0, kind: input, shape index: {}]
  %s1 = inlined_call_operand.vmem [shape: bf16[96,32], index: 1, kind: input, shape index: {}]
  %s2 = inlined_call_operand.vmem [shape: f32[96,1], index: 2, kind: input, shape index: {}]
  %s3 = inlined_call_operand.vmem [shape: bf16[4,128,128], index: 3, kind: input, shape index: {}]
  %s4 = inlined_call_operand.vmem [shape: bf16[32,32], index: 4, kind: input, shape index: {}]
  %s5 = inlined_call_operand.vmem [shape: f32[1,32], index: 5, kind: input, shape index: {}]
  %s6 = inlined_call_operand.vmem [shape: bf16[2,128,128], index: 6, kind: input, shape index: {}]
  %s7 = inlined_call_operand.vmem [shape: f32[4,128,32], index: 7, kind: output, shape index: {}]
  %s8 = sld [smem:[#allocation0]]
  $region75: #{tpu_custom_call.1} parent=0
    _
  %s10 = ssub.s32 1, %s8
  %s11 = scalar_select 0, %s10, %s8
  loop: start=0, step=1, limit=4
  $region2: #{tpu_custom_call.1} parent=0 // loop_pre_header
    _
  $region3: #{tpu_custom_call.1} parent=0 // loop_header
    %s13 = sphi 0, %s17
    %p14 = scmp.ge.s32.totalorder %s13, 4
    %s23 = sphi 0, %s25
    %s26 = sphi 0, %s23
    %s27 = sphi 0, %s26
    %s43 = sphi 0, %s27
    %s47 = sphi 0, %s47
    %s49 = sphi 0, %s47
    %s50 = sphi 0, %s49
    %s64 = sphi 0, %s50
    %s68 = sphi 0, %s68
    %s70 = sphi 0, %s68
    %s71 = sphi 0, %s70
    %s85 = sphi 0, %s71
    %s89 = sphi 0, %s89
    %s91 = sphi 0, %s89
    %s92 = sphi 0, %s91
    %s106 = sphi 0, %s92
    %s110 = sphi 0, %s110
    %s112 = sphi 0, %s110
    %s113 = sphi 0, %s112
    %s127 = sphi 0, %s113
    %s131 = sphi 0, %s131
    %s133 = sphi 0, %s131
    %s134 = sphi 0, %s133
    %s148 = sphi 0, %s134
    %s152 = sphi 0, %s152
    %s154 = sphi 0, %s152
    %s155 = sphi 0, %s154
    %s169 = sphi 0, %s155
    %s175 = sphi 0, %s177
    %s178 = sphi 0, %s175
    %s179 = sphi 0, %s178
    %s195 = sphi 0, %s179
  $region4: #{tpu_custom_call.1} parent=0 // loop_header_branch
    %16 = sbr.rel (%p14) target = $region8
  $region5: #{tpu_custom_call.1} parent=0 // loop_body
    %s18 = ssub.s32 %s13, 1
    %s19 = ssub.s32 %s13, 2
    %s20 = sadd.s32 %s13, 1
    %s21 = ssub.s32 %s13, %s20
    %p22 = scmp.eq.s32.totalorder %s21, 0
    %s24 = sadd.s32 %s23, 1
    %s25 = scalar_select %p22, %s23, %s24
    %p28 = pneg %p22
    %p29 = scmp.eq.s32.totalorder %s13, 1
    %p30 = por %p28, %p29
    %p31 = scmp.ne.s32.totalorder %s23, %s26
    %p32 = scmp.eq.s32.totalorder %s13, 0
    %p33 = por %p31, %p32
    %p34 = scmp.ne.s32.totalorder %s23, %s26
    %p35 = scmp.eq.s32.totalorder %s18, 1
    %p36 = por %p34, %p35
    %p37 = scmp.ne.s32.totalorder %s26, %s27
    %p38 = scmp.eq.s32.totalorder %s18, 0
    %p39 = por %p37, %p38
    %p40 = scmp.ne.s32.totalorder %s26, %s27
    %p41 = scmp.eq.s32.totalorder %s19, 1
    %p42 = por %p40, %p41
    %p44 = scmp.ne.s32.totalorder %s27, %s43
    %p45 = scmp.eq.s32.totalorder %s19, 0
    %p46 = por %p44, %p45
    %s48 = sadd.s32 %s47, 1
    %p51 = scmp.eq.s32.totalorder %s13, 1
    %p52 = scmp.ne.s32.totalorder %s47, %s49
    %p53 = scmp.eq.s32.totalorder %s13, 0
    %p54 = por %p52, %p53
    %p55 = scmp.ne.s32.totalorder %s47, %s49
    %p56 = scmp.eq.s32.totalorder %s18, 1
    %p57 = por %p55, %p56
    %p58 = scmp.ne.s32.totalorder %s49, %s50
    %p59 = scmp.eq.s32.totalorder %s18, 0
    %p60 = por %p58, %p59
    %p61 = scmp.ne.s32.totalorder %s49, %s50
    %p62 = scmp.eq.s32.totalorder %s19, 1
    %p63 = por %p61, %p62
    %p65 = scmp.ne.s32.totalorder %s50, %s64
    %p66 = scmp.eq.s32.totalorder %s19, 0
    %p67 = por %p65, %p66
    %s69 = sadd.s32 %s68, 1
    %p72 = scmp.eq.s32.totalorder %s13, 1
    %p73 = scmp.ne.s32.totalorder %s68, %s70
    %p74 = scmp.eq.s32.totalorder %s13, 0
    %p75 = por %p73, %p74
    %p76 = scmp.ne.s32.totalorder %s68, %s70
    %p77 = scmp.eq.s32.totalorder %s18, 1
    %p78 = por %p76, %p77
    %p79 = scmp.ne.s32.totalorder %s70, %s71
    %p80 = scmp.eq.s32.totalorder %s18, 0
    %p81 = por %p79, %p80
    %p82 = scmp.ne.s32.totalorder %s70, %s71
    %p83 = scmp.eq.s32.totalorder %s19, 1
    %p84 = por %p82, %p83
    %p86 = scmp.ne.s32.totalorder %s71, %s85
    %p87 = scmp.eq.s32.totalorder %s19, 0
    %p88 = por %p86, %p87
    %s90 = sadd.s32 %s89, 1
    %p93 = scmp.eq.s32.totalorder %s13, 1
    %p94 = scmp.ne.s32.totalorder %s89, %s91
    %p95 = scmp.eq.s32.totalorder %s13, 0
    %p96 = por %p94, %p95
    %p97 = scmp.ne.s32.totalorder %s89, %s91
    %p98 = scmp.eq.s32.totalorder %s18, 1
    %p99 = por %p97, %p98
    %p100 = scmp.ne.s32.totalorder %s91, %s92
    %p101 = scmp.eq.s32.totalorder %s18, 0
    %p102 = por %p100, %p101
    %p103 = scmp.ne.s32.totalorder %s91, %s92
    %p104 = scmp.eq.s32.totalorder %s19, 1
    %p105 = por %p103, %p104
    %p107 = scmp.ne.s32.totalorder %s92, %s106
    %p108 = scmp.eq.s32.totalorder %s19, 0
    %p109 = por %p107, %p108
    %s111 = sadd.s32 %s110, 1
    %p114 = scmp.eq.s32.totalorder %s13, 1
    %p115 = scmp.ne.s32.totalorder %s110, %s112
    %p116 = scmp.eq.s32.totalorder %s13, 0
    %p117 = por %p115, %p116
    %p118 = scmp.ne.s32.totalorder %s110, %s112
    %p119 = scmp.eq.s32.totalorder %s18, 1
    %p120 = por %p118, %p119
    %p121 = scmp.ne.s32.totalorder %s112, %s113
    %p122 = scmp.eq.s32.totalorder %s18, 0
    %p123 = por %p121, %p122
    %p124 = scmp.ne.s32.totalorder %s112, %s113
    %p125 = scmp.eq.s32.totalorder %s19, 1
    %p126 = por %p124, %p125
    %p128 = scmp.ne.s32.totalorder %s113, %s127
    %p129 = scmp.eq.s32.totalorder %s19, 0
    %p130 = por %p128, %p129
    %s132 = sadd.s32 %s131, 1
    %p135 = scmp.eq.s32.totalorder %s13, 1
    %p136 = scmp.ne.s32.totalorder %s131, %s133
    %p137 = scmp.eq.s32.totalorder %s13, 0
    %p138 = por %p136, %p137
    %p139 = scmp.ne.s32.totalorder %s131, %s133
    %p140 = scmp.eq.s32.totalorder %s18, 1
    %p141 = por %p139, %p140
    %p142 = scmp.ne.s32.totalorder %s133, %s134
    %p143 = scmp.eq.s32.totalorder %s18, 0
    %p144 = por %p142, %p143
    %p145 = scmp.ne.s32.totalorder %s133, %s134
    %p146 = scmp.eq.s32.totalorder %s19, 1
    %p147 = por %p145, %p146
    %p149 = scmp.ne.s32.totalorder %s134, %s148
    %p150 = scmp.eq.s32.totalorder %s19, 0
    %p151 = por %p149, %p150
    %s153 = sadd.s32 %s152, 1
    %p156 = scmp.eq.s32.totalorder %s13, 1
    %p157 = scmp.ne.s32.totalorder %s152, %s154
    %p158 = scmp.eq.s32.totalorder %s13, 0
    %p159 = por %p157, %p158
    %p160 = scmp.ne.s32.totalorder %s152, %s154
    %p161 = scmp.eq.s32.totalorder %s18, 1
    %p162 = por %p160, %p161
    %p163 = scmp.ne.s32.totalorder %s154, %s155
    %p164 = scmp.eq.s32.totalorder %s18, 0
    %p165 = por %p163, %p164
    %p166 = scmp.ne.s32.totalorder %s154, %s155
    %p167 = scmp.eq.s32.totalorder %s19, 1
    %p168 = por %p166, %p167
    %p170 = scmp.ne.s32.totalorder %s155, %s169
    %p171 = scmp.eq.s32.totalorder %s19, 0
    %p172 = por %p170, %p171
    %s173 = ssub.s32 %s13, %s20
    %p174 = scmp.eq.s32.totalorder %s173, 0
    %s176 = sadd.s32 %s175, 1
    %s177 = scalar_select %p174, %s175, %s176
    %p180 = pneg %p174
    %p181 = scmp.eq.s32.totalorder %s13, 1
    %p182 = por %p180, %p181
    %p183 = scmp.ne.s32.totalorder %s175, %s178
    %p184 = scmp.eq.s32.totalorder %s13, 0
    %p185 = por %p183, %p184
    %p186 = scmp.ne.s32.totalorder %s175, %s178
    %p187 = scmp.eq.s32.totalorder %s18, 1
    %p188 = por %p186, %p187
    %p189 = scmp.ne.s32.totalorder %s178, %s179
    %p190 = scmp.eq.s32.totalorder %s18, 0
    %p191 = por %p189, %p190
    %p192 = scmp.ne.s32.totalorder %s178, %s179
    %p193 = scmp.eq.s32.totalorder %s19, 1
    %p194 = por %p192, %p193
    %p196 = scmp.ne.s32.totalorder %s179, %s195
    %p197 = scmp.eq.s32.totalorder %s19, 0
    %p198 = por %p196, %p197
    %p199 = scmp.le.s32.totalorder 1, %s13
    %p200 = scmp.lt.s32.totalorder %s13, 3
    %p201 = pnand %p199, %p200
    %p202 = pneg %p201
    // Predicated region
    $region9: #{tpu_custom_call.1} parent=5 // pred_check
      _
    $region10: #{tpu_custom_call.1} parent=5 // pred_check_branch
      %204 = sbr.rel (%p201) target = $region12
    $region11: #{tpu_custom_call.1} parent=5 // pred_region
      %s205 = ssub.s32 %s13, 1
      // Predicated region
      $region13: #{tpu_custom_call.1} parent=11 // pred_check
        %p206 = pneg %p60
      $region14: #{tpu_custom_call.1} parent=11 // pred_check_branch
        %208 = sbr.rel (%p206) target = $region16
      $region15: #{tpu_custom_call.1} parent=11 // pred_region
        _
      $region16: #{tpu_custom_call.1} parent=11 // pred_fallthru
        _
      // Predicated region
      $region17: #{tpu_custom_call.1} parent=11 // pred_check
        %p209 = pneg %p81
      $region18: #{tpu_custom_call.1} parent=11 // pred_check_branch
        %211 = sbr.rel (%p209) target = $region20
      $region19: #{tpu_custom_call.1} parent=11 // pred_region
        _
      $region20: #{tpu_custom_call.1} parent=11 // pred_fallthru
        _
      // Predicated region
      $region21: #{tpu_custom_call.1} parent=11 // pred_check
        %p212 = pneg %p102
      $region22: #{tpu_custom_call.1} parent=11 // pred_check_branch
        %214 = sbr.rel (%p212) target = $region24
      $region23: #{tpu_custom_call.1} parent=11 // pred_region
        _
      $region24: #{tpu_custom_call.1} parent=11 // pred_fallthru
        _
      // Predicated region
      $region25: #{tpu_custom_call.1} parent=11 // pred_check
        %p215 = pneg %p123
      $region26: #{tpu_custom_call.1} parent=11 // pred_check_branch
        %217 = sbr.rel (%p215) target = $region28
      $region27: #{tpu_custom_call.1} parent=11 // pred_region
        _
      $region28: #{tpu_custom_call.1} parent=11 // pred_fallthru
        _
      // Predicated region
      $region29: #{tpu_custom_call.1} parent=11 // pred_check
        %p218 = pneg %p144
      $region30: #{tpu_custom_call.1} parent=11 // pred_check_branch
        %220 = sbr.rel (%p218) target = $region32
      $region31: #{tpu_custom_call.1} parent=11 // pred_region
        _
      $region32: #{tpu_custom_call.1} parent=11 // pred_fallthru
        _
      // Predicated region
      $region33: #{tpu_custom_call.1} parent=11 // pred_check
        %p221 = pneg %p165
      $region34: #{tpu_custom_call.1} parent=11 // pred_check_branch
        %223 = sbr.rel (%p221) target = $region36
      $region35: #{tpu_custom_call.1} parent=11 // pred_region
        _
      $region36: #{tpu_custom_call.1} parent=11 // pred_fallthru
        _
    $region12: #{tpu_custom_call.1} parent=5 // pred_fallthru
      _
    %p224 = scmp.lt.s32.totalorder %s13, 2
    // Predicated region
    $region37: #{tpu_custom_call.1} parent=5 // pred_check
      %p225 = pneg %p224
    $region38: #{tpu_custom_call.1} parent=5 // pred_check_branch
      %227 = sbr.rel (%p225) target = $region40
    $region39: #{tpu_custom_call.1} parent=5 // pred_region
      // Predicated region
      $region41: #{tpu_custom_call.1} parent=39 // pred_check
        %p228 = pneg %p33
      $region42: #{tpu_custom_call.1} parent=39 // pred_check_branch
        %230 = sbr.rel (%p228) target = $region44
      $region43: #{tpu_custom_call.1} parent=39 // pred_region
        %s231 = smul.u32 2, %s13
        %p232 = scmp.lt.s32.totalorder %s231, 3
        %s233 = scalar_select %p232, %s231, 3
        %s234 = smul.addr %s233, 16
        %s235 = smul.addr %s234, 8
        %s236 = scalar_lea.vmem %s0, %s235
        %s237 = smul.u32 2, %s13
      $region44: #{tpu_custom_call.1} parent=39 // pred_fallthru
        _
    $region40: #{tpu_custom_call.1} parent=5 // pred_fallthru
      _
    %p238 = scmp.le.s32.totalorder 1, %s13
    %p239 = scmp.lt.s32.totalorder %s13, 3
    %p240 = pnand %p238, %p239
    %p241 = pneg %p240
    // Predicated region
    $region45: #{tpu_custom_call.1} parent=5 // pred_check
      _
    $region46: #{tpu_custom_call.1} parent=5 // pred_check_branch
      %243 = sbr.rel (%p240) target = $region48
    $region47: #{tpu_custom_call.1} parent=5 // pred_region
      %s244 = ssub.s32 %s13, 1
      %s245 = smul.u32 2, %s18
      %p246 = scmp.lt.s32.totalorder %s245, 3
      %s247 = scalar_select %p246, %s245, 3
      %s248 = smul.addr %s247, 16
      %s249 = smul.addr %s248, 8
      %s250 = scalar_lea.vmem %s0, %s249
      %p251 = pneg %p39
      %p252 = pneg %p36
      %p253 = pneg %p60
      %p254 = pneg %p57
      %p255 = pneg %p81
      %p256 = pneg %p78
      %p257 = pneg %p102
      %p258 = pneg %p99
      %p259 = pneg %p123
      %p260 = pneg %p120
      %p261 = pneg %p144
      %p262 = pneg %p141
      %p263 = pneg %p165
      %p264 = pneg %p162
      %p265 = pneg %p191
      %p266 = pneg %p188
      %s267 = smul.u32 2, %s18
      %p268 = scmp.lt.s32.totalorder %s267, 3
      %s269 = scalar_select %p268, %s267, 3
      %s270 = smul.addr %s269, 16
      %s271 = smul.addr %s270, 8
      %s272 = scalar_lea.vmem %s7, %s271
      %s273 = smul.u32 2, %s18
      %p274 = scmp.lt.s32.totalorder %s273, 3
      %s275 = scalar_select %p274, %s273, 3
      %s276 = smul.addr %s275, 16
      %s277 = smul.addr %s276, 8
      %s278 = scalar_lea.vmem %s0, %s277
      %s279 = smul.u32 2, %s18
      %s280 = smul.u32 2, %s18
      %p281 = scmp.lt.s32.totalorder %s280, 3
      %s282 = scalar_select %p281, %s280, 3
      %s283 = smul.addr %s282, 16
      %s284 = smul.addr %s283, 8
      %s285 = scalar_lea.vmem %s7, %s284
      %s286 = smul.u32 2, %s18
      loop: start=0, step=1, limit=2
      $region49: #{tpu_custom_call.1} parent=47 // loop_pre_header
        _
      $region50: #{tpu_custom_call.1} parent=47 // loop_header
        %s289 = sphi 0, %s293
        %p290 = scmp.ge.s32.totalorder %s289, 2
      $region51: #{tpu_custom_call.1} parent=47 // loop_header_branch
        %292 = sbr.rel (%p290) target = $region55
      $region52: #{tpu_custom_call.1} parent=47 // loop_body
        %s294 = smul.u32 %s289, 128
        %s295 = scalar_lea.vmem %s278, %s294
        %v296 = vld [vmem:[%s295] sm:$0xff]
        %v297 = vld [vmem:[%s295 + $0x8] sm:$0xff]
        %v298 = vld [vmem:[%s295 + $0x10] sm:$0xff]
        %v299 = vld [vmem:[%s295 + $0x18] sm:$0xff]
        %v300 = vld [vmem:[%s295 + $0x20] sm:$0xff]
        %v301 = vld [vmem:[%s295 + $0x28] sm:$0xff]
        %v302 = vld [vmem:[%s295 + $0x30] sm:$0xff]
        %v303 = vld [vmem:[%s295 + $0x38] sm:$0xff]
        %v304 = vld [vmem:[%s295 + $0x40] sm:$0xff]
        %v305 = vld [vmem:[%s295 + $0x48] sm:$0xff]
        %v306 = vld [vmem:[%s295 + $0x50] sm:$0xff]
        %v307 = vld [vmem:[%s295 + $0x58] sm:$0xff]
        %v308 = vld [vmem:[%s295 + $0x60] sm:$0xff]
        %v309 = vld [vmem:[%s295 + $0x68] sm:$0xff]
        %v310 = vld [vmem:[%s295 + $0x70] sm:$0xff]
        %v311 = vld [vmem:[%s295 + $0x78] sm:$0xff]
        %v312 = vpack.c.bf16 %v297, %v296
        %v313 = vpack.c.bf16 %v299, %v298
        %v314 = vpack.c.bf16 %v301, %v300
        %v315 = vpack.c.bf16 %v303, %v302
        %v316 = vpack.c.bf16 %v305, %v304
        %v317 = vpack.c.bf16 %v307, %v306
        %v318 = vpack.c.bf16 %v309, %v308
        %v319 = vpack.c.bf16 %v311, %v310
        %v320 = vld [vmem:[%s1] sm:$0xf]
        %v321 = vld [vmem:[%s1 + $0x4] sm:$0xf]
        %v322 = vld [vmem:[%s1 + $0x8] sm:$0xf]
        %v323 = vld [vmem:[%s1 + $0xc] sm:$0xf]
        %v324 = vld [vmem:[%s1 + $0x10] sm:$0xf]
        %v325 = vld [vmem:[%s1 + $0x14] sm:$0xf]
        %v326 = vld [vmem:[%s1 + $0x18] sm:$0xf]
        %v327 = vld [vmem:[%s1 + $0x1c] sm:$0xf]
        %v328 = vld [vmem:[%s1 + $0x20] sm:$0xf]
        %v329 = vld [vmem:[%s1 + $0x24] sm:$0xf]
        %v330 = vld [vmem:[%s1 + $0x28] sm:$0xf]
        %v331 = vld [vmem:[%s1 + $0x2c] sm:$0xf]
        %v332 = vld [vmem:[%s2] sm:$0xff]
        %v333 = vld [vmem:[%s2 + $0x8] sm:$0xff]
        %v334 = vld [vmem:[%s2 + $0x10] sm:$0xff]
        %v335 = vld [vmem:[%s2 + $0x18] sm:$0xff]
        %v336 = vld [vmem:[%s2 + $0x20] sm:$0xff]
        %v337 = vld [vmem:[%s2 + $0x28] sm:$0xff]
        %v338 = vld [vmem:[%s2 + $0x30] sm:$0xff]
        %v339 = vld [vmem:[%s2 + $0x38] sm:$0xff]
        %v340 = vld [vmem:[%s2 + $0x40] sm:$0xff]
        %v341 = vld [vmem:[%s2 + $0x48] sm:$0xff]
        %v342 = vld [vmem:[%s2 + $0x50] sm:$0xff]
        %v343 = vld [vmem:[%s2 + $0x58] sm:$0xff]
        %345 = vset.pattern.permute.xlu0 0
        %346 = vperm.xlu0 %345, %v332
        %v347 = vpop.permute.xlu0 %346
        %350 = vset.pattern.permute.xlu0 0
        %351 = vperm.xlu0 %350, %v333
        %v352 = vpop.permute.xlu0 %351
        %355 = vset.pattern.permute.xlu0 0
        %356 = vperm.xlu0 %355, %v334
        %v357 = vpop.permute.xlu0 %356
        %360 = vset.pattern.permute.xlu0 0
        %361 = vperm.xlu0 %360, %v335
        %v362 = vpop.permute.xlu0 %361
        %365 = vset.pattern.permute.xlu0 0
        %366 = vperm.xlu0 %365, %v336
        %v367 = vpop.permute.xlu0 %366
        %370 = vset.pattern.permute.xlu0 0
        %371 = vperm.xlu0 %370, %v337
        %v372 = vpop.permute.xlu0 %371
        %375 = vset.pattern.permute.xlu0 0
        %376 = vperm.xlu0 %375, %v338
        %v377 = vpop.permute.xlu0 %376
        %380 = vset.pattern.permute.xlu0 0
        %381 = vperm.xlu0 %380, %v339
        %v382 = vpop.permute.xlu0 %381
        %385 = vset.pattern.permute.xlu0 0
        %386 = vperm.xlu0 %385, %v340
        %v387 = vpop.permute.xlu0 %386
        %390 = vset.pattern.permute.xlu0 0
        %391 = vperm.xlu0 %390, %v341
        %v392 = vpop.permute.xlu0 %391
        %395 = vset.pattern.permute.xlu0 0
        %396 = vperm.xlu0 %395, %v342
        %v397 = vpop.permute.xlu0 %396
        %400 = vset.pattern.permute.xlu0 0
        %401 = vperm.xlu0 %400, %v343
        %v402 = vpop.permute.xlu0 %401
        %v416 = vunpack.c.l.b16 %v320
        %v417 = vunpack.c.l.b16 %v321
        %v418 = vunpack.c.l.b16 %v322
        %v419 = vunpack.c.l.b16 %v323
        %v420 = vunpack.c.l.b16 %v324
        %v421 = vunpack.c.l.b16 %v325
        %v422 = vunpack.c.l.b16 %v326
        %v423 = vunpack.c.l.b16 %v327
        %v424 = vunpack.c.l.b16 %v328
        %v425 = vunpack.c.l.b16 %v329
        %v426 = vunpack.c.l.b16 %v330
        %v427 = vunpack.c.l.b16 %v331
        %v428 = vpack.c.b16 %v417, %v416
        %v429 = vpack.c.b16 %v419, %v418
        %v430 = vpack.c.b16 %v421, %v420
        %v431 = vpack.c.b16 %v423, %v422
        %v432 = vpack.c.b16 %v425, %v424
        %v433 = vpack.c.b16 %v427, %v426
        %vm434 = vcmask 261120
        %v436 = vsel %vm434, %v428, 0
        %v439 = vsel %vm434, %v429, 0
        %v442 = vsel %vm434, %v430, 0
        %v445 = vsel %vm434, %v431, 0
        %v448 = vsel %vm434, %v432, 0
        %v451 = vsel %vm434, %v433, 0
        %v454 = vsel %vm434, %v312, 0
        %v457 = vsel %vm434, %v313, 0
        %v460 = vsel %vm434, %v314, 0
        %v463 = vsel %vm434, %v315, 0
        %v466 = vsel %vm434, %v316, 0
        %v469 = vsel %vm434, %v317, 0
        %v472 = vsel %vm434, %v318, 0
        %v475 = vsel %vm434, %v319, 0
        %477 = vmatpush.bf16.xpose.msra.mxu0 %v475
        %478 = vmatpush.bf16.xpose.msra.mxu0 %v472
        %479 = vmatpush.bf16.xpose.msra.mxu0 %v469
        %480 = vmatpush.bf16.xpose.msra.mxu0 %v466
        %481 = vmatpush.bf16.xpose.msra.mxu0 %v463
        %482 = vmatpush.bf16.xpose.msra.mxu0 %v460
        %483 = vmatpush.bf16.xpose.msra.mxu0 %v457
        %484 = vmatpush.bf16.xpose.msra.mxu0 %v454
        %485 = vmatmul.bf16.gmra.mxu0 %v436
        %v486 = vpop.f32.mrf.mxu0
        %v487 = vadd.f32 %v347, %v486
        %v488 = vpop.f32.mrf.mxu0
        %v489 = vadd.f32 %v352, %v488
        %490 = vmatmul.bf16.gmra.mxu0 %v439
        %v491 = vpop.f32.mrf.mxu0
        %v492 = vadd.f32 %v357, %v491
        %v493 = vpop.f32.mrf.mxu0
        %v494 = vadd.f32 %v362, %v493
        %495 = vmatmul.bf16.gmra.mxu0 %v442
        %v496 = vpop.f32.mrf.mxu0
        %v497 = vadd.f32 %v367, %v496
        %v498 = vpop.f32.mrf.mxu0
        %v499 = vadd.f32 %v372, %v498
        %500 = vmatmul.bf16.gmra.mxu0 %v445
        %v501 = vpop.f32.mrf.mxu0
        %v502 = vadd.f32 %v377, %v501
        %v503 = vpop.f32.mrf.mxu0
        %v504 = vadd.f32 %v382, %v503
        %505 = vmatmul.bf16.gmra.mxu0 %v448
        %v506 = vpop.f32.mrf.mxu0
        %v507 = vadd.f32 %v387, %v506
        %v508 = vpop.f32.mrf.mxu0
        %v509 = vadd.f32 %v392, %v508
        %510 = vmatmul.bf16.gmra.mxu0 %v451
        %v511 = vpop.f32.mrf.mxu0
        %v512 = vadd.f32 %v397, %v511
        %v513 = vpop.f32.mrf.mxu0
        %v514 = vadd.f32 %v402, %v513
        %515 = vdwg.mxu0
        %516 = vst [vmem:[#allocation2] sm:$0xff] %v487
        %517 = vst [vmem:[#allocation2 + $0x8] sm:$0xff] %v489
        %518 = vst [vmem:[#allocation2 + $0x10] sm:$0xff] %v492
        %519 = vst [vmem:[#allocation2 + $0x18] sm:$0xff] %v494
        %520 = vst [vmem:[#allocation2 + $0x20] sm:$0xff] %v497
        %521 = vst [vmem:[#allocation2 + $0x28] sm:$0xff] %v499
        %522 = vst [vmem:[#allocation2 + $0x30] sm:$0xff] %v502
        %523 = vst [vmem:[#allocation2 + $0x38] sm:$0xff] %v504
        %524 = vst [vmem:[#allocation2 + $0x40] sm:$0xff] %v507
        %525 = vst [vmem:[#allocation2 + $0x48] sm:$0xff] %v509
        %526 = vst [vmem:[#allocation2 + $0x50] sm:$0xff] %v512
        %527 = vst [vmem:[#allocation2 + $0x58] sm:$0xff] %v514
        loop: start=0, step=1, limit=4
        $region56: #{tpu_custom_call.1} parent=52 // loop_pre_header
          _
        $region57: #{tpu_custom_call.1} parent=52 // loop_header
          %s529 = sphi 0, %s533
          %p530 = scmp.ge.s32.totalorder %s529, 4
        $region58: #{tpu_custom_call.1} parent=52 // loop_header_branch
          %532 = sbr.rel (%p530) target = $region62
        $region59: #{tpu_custom_call.1} parent=52 // loop_body
          %s534 = smul.u32 %s529, 8
          %s535 = sadd.s32 %s534, 32
          %s536 = sadd.s32 %s534, 64
          %s537 = scalar_lea.vmem [#allocation2], %s534
          %v538 = vld [vmem:[%s537] sm:$0xff]
          %v539 = vpack.c.bf16 %v538, %v538
          %s540 = scalar_lea.vmem [#allocation2], %s535
          %v541 = vld [vmem:[%s540] sm:$0xff]
          %v542 = vpack.c.bf16 %v541, %v541
          %s543 = scalar_lea.vmem [#allocation2], %s536
          %v544 = vld [vmem:[%s543] sm:$0xff]
          %v545 = vpack.c.bf16 %v544, %v544
          %s546 = smul.u32 %s529, 16
          %s547 = smul.addr %s546, 4
          %s548 = scalar_lea.vmem %s3, %s547
          %v549 = vld [vmem:[%s548] sm:$0xf]
          %v550 = vld [vmem:[%s548 + $0x4] sm:$0xf]
          %v551 = vld [vmem:[%s548 + $0x8] sm:$0xf]
          %v552 = vld [vmem:[%s548 + $0xc] sm:$0xf]
          %v553 = vld [vmem:[%s548 + $0x10] sm:$0xf]
          %v554 = vld [vmem:[%s548 + $0x14] sm:$0xf]
          %v555 = vld [vmem:[%s548 + $0x18] sm:$0xf]
          %v556 = vld [vmem:[%s548 + $0x1c] sm:$0xf]
          %v557 = vld [vmem:[%s548 + $0x20] sm:$0xf]
          %v558 = vld [vmem:[%s548 + $0x24] sm:$0xf]
          %v559 = vld [vmem:[%s548 + $0x28] sm:$0xf]
          %v560 = vld [vmem:[%s548 + $0x2c] sm:$0xf]
          %v561 = vld [vmem:[%s548 + $0x30] sm:$0xf]
          %v562 = vld [vmem:[%s548 + $0x34] sm:$0xf]
          %v563 = vld [vmem:[%s548 + $0x38] sm:$0xf]
          %v564 = vld [vmem:[%s548 + $0x3c] sm:$0xf]
          %v565 = vunpack.c.l.bf16 %v549
          %v566 = vunpack.c.l.bf16 %v550
          %v567 = vunpack.c.l.bf16 %v551
          %v568 = vunpack.c.l.bf16 %v552
          %v569 = vunpack.c.l.bf16 %v553
          %v570 = vunpack.c.l.bf16 %v554
          %v571 = vunpack.c.l.bf16 %v555
          %v572 = vunpack.c.l.bf16 %v556
          %v573 = vunpack.c.l.bf16 %v557
          %v574 = vunpack.c.l.bf16 %v558
          %v575 = vunpack.c.l.bf16 %v559
          %v576 = vunpack.c.l.bf16 %v560
          %v577 = vunpack.c.l.bf16 %v561
          %v578 = vunpack.c.l.bf16 %v562
          %v579 = vunpack.c.l.bf16 %v563
          %v580 = vunpack.c.l.bf16 %v564
          %581 = vxpose.xlu0.c.b16.start [1/8] %v542, 128
          %582 = vxpose.xlu0.c.b16.cont [2/8] 0, 128
          %583 = vxpose.xlu0.c.b16.cont [3/8] 0, 128
          %584 = vxpose.xlu0.c.b16.cont [4/8] 0, 128
          %585 = vxpose.xlu0.c.b16.cont [5/8] 0, 128
          %586 = vxpose.xlu0.c.b16.cont [6/8] 0, 128
          %587 = vxpose.xlu0.c.b16.cont [7/8] 0, 128
          %588 = vxpose.xlu0.c.b16.end [8/8] 0, 128
          %v589 = vpop.trf.xlu0
          %v590 = vpop.trf.xlu0
          %v591 = vpop.trf.xlu0
          %v592 = vpop.trf.xlu0
          %v593 = vpop.trf.xlu0
          %v594 = vpop.trf.xlu0
          %v595 = vpop.trf.xlu0
          %v596 = vpop.trf.xlu0
          %vm597 = vcmask 64512
          %v599 = vsel %vm597, %v589, 0
          %v602 = vsel %vm597, %v590, 0
          %v605 = vsel %vm597, %v591, 0
          %v608 = vsel %vm597, %v592, 0
          %v611 = vsel %vm597, %v593, 0
          %v614 = vsel %vm597, %v594, 0
          %v617 = vsel %vm597, %v595, 0
          %v620 = vsel %vm597, %v596, 0
          %vm622 = vcmask 1043456
          %v624 = vsel %vm622, %v539, 0
          %626 = vmatpush.bf16.msra.mxu0 0
          %627 = vmatpush.bf16.msra.mxu0 0
          %628 = vmatpush.bf16.msra.mxu0 0
          %629 = vmatpush.bf16.msra.mxu0 0
          %630 = vmatpush.bf16.msra.mxu0 0
          %631 = vmatpush.bf16.msra.mxu0 0
          %632 = vmatpush.bf16.msra.mxu0 0
          %633 = vmatpush.bf16.msra.mxu0 %v624
          %634 = vmatmul.bf16.gmra.mxu0 %v599
          %v635 = vpop.f32.mrf.mxu0
          %v636 = vadd.f32 %v565, %v635
          %v637 = vpop.f32.mrf.mxu0
          %v638 = vadd.f32 %v566, %v637
          %639 = vmatmul.bf16.gmra.mxu0 %v602
          %v640 = vpop.f32.mrf.mxu0
          %v641 = vadd.f32 %v567, %v640
          %v642 = vpop.f32.mrf.mxu0
          %v643 = vadd.f32 %v568, %v642
          %644 = vmatmul.bf16.gmra.mxu0 %v605
          %v645 = vpop.f32.mrf.mxu0
          %v646 = vadd.f32 %v569, %v645
          %v647 = vpop.f32.mrf.mxu0
          %v648 = vadd.f32 %v570, %v647
          %649 = vmatmul.bf16.gmra.mxu0 %v608
          %v650 = vpop.f32.mrf.mxu0
          %v651 = vadd.f32 %v571, %v650
          %v652 = vpop.f32.mrf.mxu0
          %v653 = vadd.f32 %v572, %v652
          %654 = vmatmul.bf16.gmra.mxu0 %v611
          %v655 = vpop.f32.mrf.mxu0
          %v656 = vadd.f32 %v573, %v655
          %v657 = vpop.f32.mrf.mxu0
          %v658 = vadd.f32 %v574, %v657
          %659 = vmatmul.bf16.gmra.mxu0 %v614
          %v660 = vpop.f32.mrf.mxu0
          %v661 = vadd.f32 %v575, %v660
          %v662 = vpop.f32.mrf.mxu0
          %v663 = vadd.f32 %v576, %v662
          %664 = vmatmul.bf16.gmra.mxu0 %v617
          %v665 = vpop.f32.mrf.mxu0
          %v666 = vadd.f32 %v577, %v665
          %v667 = vpop.f32.mrf.mxu0
          %v668 = vadd.f32 %v578, %v667
          %669 = vmatmul.bf16.gmra.mxu0 %v620
          %v670 = vpop.f32.mrf.mxu0
          %v671 = vadd.f32 %v579, %v670
          %v672 = vpop.f32.mrf.mxu0
          %v673 = vadd.f32 %v580, %v672
          %674 = vdwg.mxu0
          %p675 = scmp.lt.s32.totalorder %s289, 0
          %s676 = ssub.s32 0, %s289
          %s677 = scalar_select %p675, %s676, %s289
          %s678 = sand.u32 %s677, 1
          %s679 = ssub.s32 0, %s678
          %s680 = scalar_select %p675, %s679, %s678
          %p681 = scmp.ne.s32.totalorder %s680, 0
          %p682 = scmp.lt.s32.totalorder %s680, 0
          %p683 = pnand %p682, %p681
          %p684 = pneg %p683
          %s685 = sadd.s32 %s680, 2
          %s686 = scalar_select %p684, %s685, %s680
          %s687 = smul.u32 %s686, 16
          %s688 = smul.addr %s687, 4
          %s689 = scalar_lea.vmem %s6, %s688
          %v690 = vld [vmem:[%s689] sm:$0xf]
          %v691 = vld [vmem:[%s689 + $0x4] sm:$0xf]
          %v692 = vld [vmem:[%s689 + $0x8] sm:$0xf]
          %v693 = vld [vmem:[%s689 + $0xc] sm:$0xf]
          %v694 = vld [vmem:[%s689 + $0x10] sm:$0xf]
          %v695 = vld [vmem:[%s689 + $0x14] sm:$0xf]
          %v696 = vld [vmem:[%s689 + $0x18] sm:$0xf]
          %v697 = vld [vmem:[%s689 + $0x1c] sm:$0xf]
          %v698 = vld [vmem:[%s689 + $0x20] sm:$0xf]
          %v699 = vld [vmem:[%s689 + $0x24] sm:$0xf]
          %v700 = vld [vmem:[%s689 + $0x28] sm:$0xf]
          %v701 = vld [vmem:[%s689 + $0x2c] sm:$0xf]
          %v702 = vld [vmem:[%s689 + $0x30] sm:$0xf]
          %v703 = vld [vmem:[%s689 + $0x34] sm:$0xf]
          %v704 = vld [vmem:[%s689 + $0x38] sm:$0xf]
          %v705 = vld [vmem:[%s689 + $0x3c] sm:$0xf]
          %v706 = vunpack.c.l.bf16 %v690
          %v707 = vunpack.c.l.bf16 %v691
          %v708 = vunpack.c.l.bf16 %v692
          %v709 = vunpack.c.l.bf16 %v693
          %v710 = vunpack.c.l.bf16 %v694
          %v711 = vunpack.c.l.bf16 %v695
          %v712 = vunpack.c.l.bf16 %v696
          %v713 = vunpack.c.l.bf16 %v697
          %v714 = vunpack.c.l.bf16 %v698
          %v715 = vunpack.c.l.bf16 %v699
          %v716 = vunpack.c.l.bf16 %v700
          %v717 = vunpack.c.l.bf16 %v701
          %v718 = vunpack.c.l.bf16 %v702
          %v719 = vunpack.c.l.bf16 %v703
          %v720 = vunpack.c.l.bf16 %v704
          %v721 = vunpack.c.l.bf16 %v705
          %v722 = vadd.f32 %v636, %v706
          %v723 = vadd.f32 %v638, %v707
          %v724 = vadd.f32 %v641, %v708
          %v725 = vadd.f32 %v643, %v709
          %v726 = vadd.f32 %v646, %v710
          %v727 = vadd.f32 %v648, %v711
          %v728 = vadd.f32 %v651, %v712
          %v729 = vadd.f32 %v653, %v713
          %v730 = vadd.f32 %v656, %v714
          %v731 = vadd.f32 %v658, %v715
          %v732 = vadd.f32 %v661, %v716
          %v733 = vadd.f32 %v663, %v717
          %v734 = vadd.f32 %v666, %v718
          %v735 = vadd.f32 %v668, %v719
          %v736 = vadd.f32 %v671, %v720
          %v737 = vadd.f32 %v673, %v721
          %v738 = vmax.f32 %v722, %v726
          %v739 = vmax.f32 %v723, %v727
          %v740 = vmax.f32 %v724, %v728
          %v741 = vmax.f32 %v725, %v729
          %v742 = vmax.f32 %v738, %v730
          %v743 = vmax.f32 %v739, %v731
          %v744 = vmax.f32 %v740, %v732
          %v745 = vmax.f32 %v741, %v733
          %v746 = vmax.f32 %v742, %v734
          %v747 = vmax.f32 %v743, %v735
          %v748 = vmax.f32 %v744, %v736
          %v749 = vmax.f32 %v745, %v737
          %v750 = vmax.f32 %v746, %v747
          %v751 = vmax.f32 %v748, %v749
          %v752 = vmax.f32 %v750, %v751
          %v753 = vrot.slane %v752, 4
          %v754 = vmax.f32 %v752, %v753
          %v755 = vrot.slane %v754, 2
          %v756 = vmax.f32 %v754, %v755
          %v757 = vrot.slane %v756, 1
          %v758 = vmax.f32 %v756, %v757
          %v759 = vsub.f32 %v722, %v758
          %v760 = vsub.f32 %v723, %v758
          %v761 = vsub.f32 %v724, %v758
          %v762 = vsub.f32 %v725, %v758
          %v763 = vsub.f32 %v726, %v758
          %v764 = vsub.f32 %v727, %v758
          %v765 = vsub.f32 %v728, %v758
          %v766 = vsub.f32 %v729, %v758
          %v767 = vsub.f32 %v730, %v758
          %v768 = vsub.f32 %v731, %v758
          %v769 = vsub.f32 %v732, %v758
          %v770 = vsub.f32 %v733, %v758
          %v771 = vsub.f32 %v734, %v758
          %v772 = vsub.f32 %v735, %v758
          %v773 = vsub.f32 %v736, %v758
          %v774 = vsub.f32 %v737, %v758
          %v775 = vmul.f32 %v759, 1.442695
          %v776 = vpow.pop %v775
          %v777 = vmul.f32 %v760, 1.442695
          %v778 = vpow.pop %v777
          %v779 = vmul.f32 %v761, 1.442695
          %v780 = vpow.pop %v779
          %v781 = vmul.f32 %v762, 1.442695
          %v782 = vpow.pop %v781
          %v783 = vmul.f32 %v763, 1.442695
          %v784 = vpow.pop %v783
          %v785 = vmul.f32 %v764, 1.442695
          %v786 = vpow.pop %v785
          %v787 = vmul.f32 %v765, 1.442695
          %v788 = vpow.pop %v787
          %v789 = vmul.f32 %v766, 1.442695
          %v790 = vpow.pop %v789
          %v791 = vmul.f32 %v767, 1.442695
          %v792 = vpow.pop %v791
          %v793 = vmul.f32 %v768, 1.442695
          %v794 = vpow.pop %v793
          %v795 = vmul.f32 %v769, 1.442695
          %v796 = vpow.pop %v795
          %v797 = vmul.f32 %v770, 1.442695
          %v798 = vpow.pop %v797
          %v799 = vmul.f32 %v771, 1.442695
          %v800 = vpow.pop %v799
          %v801 = vmul.f32 %v772, 1.442695
          %v802 = vpow.pop %v801
          %v803 = vmul.f32 %v773, 1.442695
          %v804 = vpow.pop %v803
          %v805 = vmul.f32 %v774, 1.442695
          %v806 = vpow.pop %v805
          %v807 = vadd.f32 %v776, %v778
          %v808 = vadd.f32 %v807, %v780
          %v809 = vadd.f32 %v808, %v782
          %v810 = vadd.f32 %v809, %v784
          %v811 = vadd.f32 %v810, %v786
          %v812 = vadd.f32 %v811, %v788
          %v813 = vadd.f32 %v812, %v790
          %v814 = vadd.f32 %v813, %v792
          %v815 = vadd.f32 %v814, %v794
          %v816 = vadd.f32 %v815, %v796
          %v817 = vadd.f32 %v816, %v798
          %v818 = vadd.f32 %v817, %v800
          %v819 = vadd.f32 %v818, %v802
          %v820 = vadd.f32 %v819, %v804
          %v821 = vadd.f32 %v820, %v806
          %v822 = vrot.slane %v821, 4
          %v823 = vadd.f32 %v821, %v822
          %v824 = vrot.slane %v823, 2
          %v825 = vadd.f32 %v823, %v824
          %v826 = vrot.slane %v825, 1
          %v827 = vadd.f32 %v825, %v826
          %v828 = vpack.c.bf16 %v778, %v776
          %v829 = vpack.c.bf16 %v782, %v780
          %v830 = vpack.c.bf16 %v786, %v784
          %v831 = vpack.c.bf16 %v790, %v788
          %v832 = vpack.c.bf16 %v794, %v792
          %v833 = vpack.c.bf16 %v798, %v796
          %v834 = vpack.c.bf16 %v802, %v800
          %v835 = vpack.c.bf16 %v806, %v804
          %836 = vmatpush.bf16.msra.mxu0 %v835
          %837 = vmatpush.bf16.msra.mxu0 %v834
          %838 = vmatpush.bf16.msra.mxu0 %v833
          %839 = vmatpush.bf16.msra.mxu0 %v832
          %840 = vmatpush.bf16.msra.mxu0 %v831
          %841 = vmatpush.bf16.msra.mxu0 %v830
          %842 = vmatpush.bf16.msra.mxu0 %v829
          %843 = vmatpush.bf16.msra.mxu0 %v828
          %844 = vmatmul.bf16.gmra.mxu0 %v545
          %v845 = vpop.f32.mrf.mxu0
          %v846 = vadd.f32 0.0, %v845
          %v847 = vpop.f32.mrf.mxu0
          %848 = vdwg.mxu0
          %v849 = vrcp.pop %v827
          %v850 = vmul.f32 %v846, %v849
          %s851 = scalar_lea.vmem [#allocation3], %s534
          %852 = vst [vmem:[%s851] sm:$0xff] %v850
        $region60: #{tpu_custom_call.1} parent=52 // loop_footer
          %s533 = sadd.s32 1, %s529
        $region61: #{tpu_custom_call.1} parent=52 // loop_footer_branch
          %528 = sbr.rel target = $region57
        $region62: #{tpu_custom_call.1} parent=52 // loop_exit
          _
        %v853 = vld [vmem:[#allocation3] sm:$0xff]
        %v854 = vld [vmem:[#allocation3 + $0x8] sm:$0xff]
        %v855 = vld [vmem:[#allocation3 + $0x10] sm:$0xff]
        %v856 = vld [vmem:[#allocation3 + $0x18] sm:$0xff]
        %v857 = vpack.c.bf16 %v854, %v853
        %v858 = vpack.c.bf16 %v856, %v855
        %v859 = vld [vmem:[%s4] sm:$0xf]
        %v860 = vld [vmem:[%s4 + $0x4] sm:$0xf]
        %v861 = vld [vmem:[%s4 + $0x8] sm:$0xf]
        %v862 = vld [vmem:[%s4 + $0xc] sm:$0xf]
        %v863 = vld [vmem:[%s5] sm:$0x1]
        %v865 = vperm.slane %v863, 0
        %867 = vxpose.xlu0.c.b16.start [1/8] %v857, 128
        %868 = vxpose.xlu0.c.b16.cont [2/8] %v858, 128
        %869 = vxpose.xlu0.c.b16.cont [3/8] 0, 128
        %870 = vxpose.xlu0.c.b16.cont [4/8] 0, 128
        %871 = vxpose.xlu0.c.b16.cont [5/8] 0, 128
        %872 = vxpose.xlu0.c.b16.cont [6/8] 0, 128
        %873 = vxpose.xlu0.c.b16.cont [7/8] 0, 128
        %874 = vxpose.xlu0.c.b16.end [8/8] 0, 128
        %v875 = vpop.trf.xlu0
        %v876 = vpop.trf.xlu0
        %v877 = vpop.trf.xlu0
        %v878 = vpop.trf.xlu0
        %v879 = vpop.trf.xlu0
        %v880 = vpop.trf.xlu0
        %v881 = vpop.trf.xlu0
        %v882 = vpop.trf.xlu0
        %v887 = vunpack.c.l.b16 %v859
        %v888 = vunpack.c.l.b16 %v860
        %v889 = vunpack.c.l.b16 %v861
        %v890 = vunpack.c.l.b16 %v862
        %v891 = vpack.c.b16 %v888, %v887
        %v892 = vpack.c.b16 %v890, %v889
        %v896 = vsel %vm434, %v875, 0
        %v899 = vsel %vm434, %v876, 0
        %v902 = vsel %vm434, %v877, 0
        %v905 = vsel %vm434, %v878, 0
        %v908 = vsel %vm434, %v879, 0
        %v911 = vsel %vm434, %v880, 0
        %v914 = vsel %vm434, %v881, 0
        %v917 = vsel %vm434, %v882, 0
        %919 = vmatpush.bf16.msra.mxu0 0
        %920 = vmatpush.bf16.msra.mxu0 0
        %921 = vmatpush.bf16.msra.mxu0 0
        %922 = vmatpush.bf16.msra.mxu0 0
        %923 = vmatpush.bf16.msra.mxu0 0
        %924 = vmatpush.bf16.msra.mxu0 0
        %925 = vmatpush.bf16.msra.mxu0 %v892
        %926 = vmatpush.bf16.msra.mxu0 %v891
        %927 = vmatmul.bf16.gmra.mxu0 %v896
        %v928 = vpop.f32.mrf.mxu0
        %v929 = vadd.f32 %v865, %v928
        %v930 = vpop.f32.mrf.mxu0
        %v931 = vadd.f32 %v865, %v930
        %932 = vmatmul.bf16.gmra.mxu0 %v899
        %v933 = vpop.f32.mrf.mxu0
        %v934 = vadd.f32 %v865, %v933
        %v935 = vpop.f32.mrf.mxu0
        %v936 = vadd.f32 %v865, %v935
        %937 = vmatmul.bf16.gmra.mxu0 %v902
        %v938 = vpop.f32.mrf.mxu0
        %v939 = vadd.f32 %v865, %v938
        %v940 = vpop.f32.mrf.mxu0
        %v941 = vadd.f32 %v865, %v940
        %942 = vmatmul.bf16.gmra.mxu0 %v905
        %v943 = vpop.f32.mrf.mxu0
        %v944 = vadd.f32 %v865, %v943
        %v945 = vpop.f32.mrf.mxu0
        %v946 = vadd.f32 %v865, %v945
        %947 = vmatmul.bf16.gmra.mxu0 %v908
        %v948 = vpop.f32.mrf.mxu0
        %v949 = vadd.f32 %v865, %v948
        %v950 = vpop.f32.mrf.mxu0
        %v951 = vadd.f32 %v865, %v950
        %952 = vmatmul.bf16.gmra.mxu0 %v911
        %v953 = vpop.f32.mrf.mxu0
        %v954 = vadd.f32 %v865, %v953
        %v955 = vpop.f32.mrf.mxu0
        %v956 = vadd.f32 %v865, %v955
        %957 = vmatmul.bf16.gmra.mxu0 %v914
        %v958 = vpop.f32.mrf.mxu0
        %v959 = vadd.f32 %v865, %v958
        %v960 = vpop.f32.mrf.mxu0
        %v961 = vadd.f32 %v865, %v960
        %962 = vmatmul.bf16.gmra.mxu0 %v917
        %v963 = vpop.f32.mrf.mxu0
        %v964 = vadd.f32 %v865, %v963
        %v965 = vpop.f32.mrf.mxu0
        %v966 = vadd.f32 %v865, %v965
        %967 = vdwg.mxu0
        %s968 = scalar_lea.vmem %s285, %s294
        %969 = vst.msk [vmem:[%s968] sm:$0xff] %vm434, %v929
        %970 = vst.msk [vmem:[%s968 + $0x8] sm:$0xff] %vm434, %v931
        %971 = vst.msk [vmem:[%s968 + $0x10] sm:$0xff] %vm434, %v934
        %972 = vst.msk [vmem:[%s968 + $0x18] sm:$0xff] %vm434, %v936
        %973 = vst.msk [vmem:[%s968 + $0x20] sm:$0xff] %vm434, %v939
        %974 = vst.msk [vmem:[%s968 + $0x28] sm:$0xff] %vm434, %v941
        %975 = vst.msk [vmem:[%s968 + $0x30] sm:$0xff] %vm434, %v944
        %976 = vst.msk [vmem:[%s968 + $0x38] sm:$0xff] %vm434, %v946
        %977 = vst.msk [vmem:[%s968 + $0x40] sm:$0xff] %vm434, %v949
        %978 = vst.msk [vmem:[%s968 + $0x48] sm:$0xff] %vm434, %v951
        %979 = vst.msk [vmem:[%s968 + $0x50] sm:$0xff] %vm434, %v954
        %980 = vst.msk [vmem:[%s968 + $0x58] sm:$0xff] %vm434, %v956
        %981 = vst.msk [vmem:[%s968 + $0x60] sm:$0xff] %vm434, %v959
        %982 = vst.msk [vmem:[%s968 + $0x68] sm:$0xff] %vm434, %v961
        %983 = vst.msk [vmem:[%s968 + $0x70] sm:$0xff] %vm434, %v964
        %984 = vst.msk [vmem:[%s968 + $0x78] sm:$0xff] %vm434, %v966
      $region53: #{tpu_custom_call.1} parent=47 // loop_footer
        %s293 = sadd.s32 1, %s289
      $region54: #{tpu_custom_call.1} parent=47 // loop_footer_branch
        %288 = sbr.rel target = $region50
      $region55: #{tpu_custom_call.1} parent=47 // loop_exit
        _
      %s985 = smul.u32 2, %s18
      %p986 = scmp.lt.s32.totalorder %s985, 3
      %s987 = scalar_select %p986, %s985, 3
      %s988 = smul.addr %s987, 16
      %s989 = smul.addr %s988, 8
      %s990 = scalar_lea.vmem %s7, %s989
      // Predicated region
      $region63: #{tpu_custom_call.1} parent=47 // pred_check
        %p991 = pneg %p188
      $region64: #{tpu_custom_call.1} parent=47 // pred_check_branch
        %993 = sbr.rel (%p991) target = $region66
      $region65: #{tpu_custom_call.1} parent=47 // pred_region
        %s994 = smul.u32 2, %s18
      $region66: #{tpu_custom_call.1} parent=47 // pred_fallthru
        _
    $region48: #{tpu_custom_call.1} parent=5 // pred_fallthru
      _
    %p995 = scmp.le.s32.totalorder 2, %s13
    // Predicated region
    $region67: #{tpu_custom_call.1} parent=5 // pred_check
      %p996 = pneg %p995
    $region68: #{tpu_custom_call.1} parent=5 // pred_check_branch
      %998 = sbr.rel (%p996) target = $region70
    $region69: #{tpu_custom_call.1} parent=5 // pred_region
      %s999 = ssub.s32 %s13, 2
      // Predicated region
      $region71: #{tpu_custom_call.1} parent=69 // pred_check
        %p1000 = pneg %p194
      $region72: #{tpu_custom_call.1} parent=69 // pred_check_branch
        %1002 = sbr.rel (%p1000) target = $region74
      $region73: #{tpu_custom_call.1} parent=69 // pred_region
        %s1003 = smul.u32 2, %s19
        %p1004 = scmp.lt.s32.totalorder %s1003, 3
        %s1005 = scalar_select %p1004, %s1003, 3
        %s1006 = smul.addr %s1005, 16
        %s1007 = smul.addr %s1006, 8
        %s1008 = scalar_lea.vmem %s7, %s1007
      $region74: #{tpu_custom_call.1} parent=69 // pred_fallthru
        _
    $region70: #{tpu_custom_call.1} parent=5 // pred_fallthru
      _
  $region6: #{tpu_custom_call.1} parent=0 // loop_footer
    %s17 = sadd.s32 1, %s13
  $region7: #{tpu_custom_call.1} parent=0 // loop_footer_branch
    %12 = sbr.rel target = $region3
  $region8: #{tpu_custom_call.1} parent=0 // loop_exit
    _

</llo_original>
